<compile_context>
chip_gen: v6e
topology: v6e:2x2x1
jax: 0.10.0
libtpu: 0.0.40
codegen_flags: <defaults>
</compile_context>

<pallas_src>
import functools

import jax
import jax.numpy as jnp
from jax.experimental import pallas as pl
from jax.experimental.pallas import tpu as pltpu


# --------------------------------------------------------------------------
# Kernel
# --------------------------------------------------------------------------
def _bidaf_kernel(p_ref, q_ref, w_ref, o_ref, acc_ref, sp_ref, sq_ref, *,
                  matmul_dtype):
    # p_ref: (BB, TP, TD)   q_ref: (BB, TQ, TD)   (streamed at MXU dtype)
    # w_ref: (3, TD) f32 = [w_concat; w_passage; w_query]
    # o_ref: (BB, TP, TQ)
    # acc_ref: (BB, TP, TQ) f32, sp_ref: (BB, TP, 1) f32, sq_ref: (BB, 1, TQ) f32
    j = pl.program_id(2)          # query-tile axis
    k = pl.program_id(3)          # feature (D) axis
    nk = pl.num_programs(3)

    p = p_ref[...]
    q = q_ref[...]
    wc = w_ref[0:1, :]            # (1, TD)
    wp = w_ref[1:2, :]            # (1, TD)
    wq = w_ref[2:3, :]            # (1, TD)

    bb, _, td = q.shape

    @pl.when(k == 0)
    def _():
        acc_ref[...] = jnp.zeros_like(acc_ref)
        sq_ref[...] = jnp.zeros_like(sq_ref)

    @pl.when(jnp.logical_and(j == 0, k == 0))
    def _():
        sp_ref[...] = jnp.zeros_like(sp_ref)

    p_m = p.astype(matmul_dtype)
    q_m = q.astype(matmul_dtype)

    # Fold w_concat into the (smaller) query operand: (passage*wc) @ q^T ==
    # passage @ (q*wc)^T.  Contract the LAST dims of both operands -> MXU,
    # no explicit transpose through the XLU.
    qc = q_m * wc.astype(matmul_dtype)
    acc_ref[...] += jax.lax.dot_general(
        p_m, qc,
        dimension_numbers=(((2,), (2,)), ((0,), (0,))),
        preferred_element_type=jnp.float32)                 # (BB, TP, TQ) f32

    # Passage linear term: computed once per (batch, passage tile), reused
    # from scratch across all query tiles.
    @pl.when(j == 0)
    def _():
        sp_ref[...] += jnp.sum(p.astype(jnp.float32) * wp, axis=2,
                               keepdims=True)               # (BB, TP, 1)

    # Query linear term: lane-oriented (BB, 1, TQ) via a tiny MXU matmul
    # (avoids a sublane->lane transpose of a (TQ, 1) reduction).
    wq_b = jnp.broadcast_to(wq.astype(matmul_dtype)[None, :, :], (bb, 1, td))
    sq_ref[...] += jax.lax.dot_general(
        wq_b, q_m,
        dimension_numbers=(((2,), (2,)), ((0,), (0,))),
        preferred_element_type=jnp.float32)                 # (BB, 1, TQ)

    @pl.when(k == nk - 1)
    def _():
        o_ref[...] = (acc_ref[...] + sp_ref[...] + sq_ref[...]).astype(o_ref.dtype)


# --------------------------------------------------------------------------
# Sizing helpers (generation-aware)
# --------------------------------------------------------------------------
def _vmem_capacity_bytes():
    try:
        info = pltpu.get_tpu_info()
        cap = getattr(info, "vmem_capacity_bytes", None)
        if cap:
            return int(cap)
    except Exception:
        pass
    return 64 << 20   # conservative: v7x per-TensorCore VMEM


def _vmem_bytes(bb, tp, tq, td, in_b, out_b):
    # Double-buffered blocks + scratch + in-kernel temporaries (f32 casts,
    # dot_general result) -- the previous version under-counted these.
    blocks = 2 * bb * (tp + tq) * td * in_b        # input tiles (2 buffers each)
    blocks += 2 * 3 * td * 4                       # stacked weight rows
    blocks += 2 * bb * tp * tq * out_b             # output tile
    scratch = bb * (tp * tq + tp + tq) * 4         # acc + s_p + s_q (f32)
    temps = bb * (tp * tq + (tp + tq) * td) * 4    # dot result + f32 temporaries
    return blocks + scratch + temps


def _auto_tiles(P, Q, D, in_b, out_b, budget):
    # TQ: full Q (single j step, no passage re-read) or a multiple of 128
    #     (output lane dim constraint).  TP: full P or a multiple of 8.
    # TD: full D or a multiple of 128 that divides D (ragged D blocks would
    #     contaminate the contraction, so TD must divide D exactly).
    tq_opts = ([Q] if Q <= 512 else []) + [t for t in (512, 256, 128) if t < Q]
    if not tq_opts:
        tq_opts = [Q]
    tp_opts = ([P] if P <= 512 else []) + \
        [t for t in (512, 256, 128, 64, 32, 16, 8) if t < P]
    if not tp_opts:
        tp_opts = [P]
    td_opts = ([D] if D <= 2048 else []) + \
        [t for t in (2048, 1024, 512, 256, 128) if t < D and D % t == 0]
    if not td_opts:
        td_opts = [D]

    # Keep TQ (MXU lane width) and TD as large as possible; shrink TP first.
    for tq in tq_opts:
        for td in td_opts:
            for tp in tp_opts:
                if _vmem_bytes(1, tp, tq, td, in_b, out_b) <= budget:
                    return tp, tq, td
    return tp_opts[-1], tq_opts[-1], td_opts[-1]


# --------------------------------------------------------------------------
# Wrapper
# --------------------------------------------------------------------------
def bidaf_bilinear_forward(passage_vectors, query_vectors,
                           w_concat, w_passage, w_query, *,
                           matmul_dtype=jnp.bfloat16, out_dtype=None,
                           tile_p=None, tile_q=None, tile_d=None):
    """passage: (B, P, D), query: (B, Q, D), w_*: D elements each."""
    B, P, D = passage_vectors.shape
    Bq, Q, Dq = query_vectors.shape
    assert B == Bq and D == Dq, "bmm in the reference requires matching dims"
    assert w_concat.size == D and w_passage.size == D and w_query.size == D

    out_dtype = (jnp.dtype(passage_vectors.dtype) if out_dtype is None
                 else jnp.dtype(out_dtype))
    mm_dt = jnp.dtype(matmul_dtype)
    in_dt = jnp.dtype(passage_vectors.dtype)
    stream_dt = mm_dt if mm_dt.itemsize < in_dt.itemsize else in_dt

    # Stream inputs at the MXU operand width (single fused cast pass in the
    # wrapper; halves HBM reads on the bf16 path).
    x_p = passage_vectors.astype(stream_dt)
    x_q = query_vectors.astype(stream_dt)

    # Stack the three weight rows into one (3, D) f32 block (single buffer).
    w = jnp.concatenate([jnp.reshape(w_concat, (1, D)),
                         jnp.reshape(w_passage, (1, D)),
                         jnp.reshape(w_query, (1, D))], axis=0).astype(jnp.float32)

    in_b = stream_dt.itemsize
    out_b = out_dtype.itemsize

    # Generation-aware VMEM budget (v5e/v6e ~128 MiB, v7x ~64 MiB per core).
    cap = _vmem_capacity_bytes()
    budget = int(cap * 0.55)

    TP, TQ, TD = _auto_tiles(P, Q, D, in_b, out_b, budget)
    if tile_p is not None:
        assert tile_p == P or (tile_p % 8 == 0 and tile_p <= P)
        TP = tile_p
    if tile_q is not None:
        assert tile_q == Q or (tile_q % 128 == 0 and tile_q <= Q)
        TQ = tile_q
    if tile_d is not None:
        assert tile_d == D or (tile_d % 128 == 0 and D % tile_d == 0)
        TD = tile_d

    # Batch packing: budget-driven, no divisibility requirement on B (ragged
    # last batch block is dropped on writeback).  When the passage axis has a
    # single tile, keep >= 2 batch steps so both v7x TensorCores get work.
    nP = pl.cdiv(P, TP)
    bb_cap = B if nP >= 2 else max(1, B // 2)
    BB = 1
    while BB < bb_cap and _vmem_bytes(BB + 1, TP, TQ, TD, in_b, out_b) <= budget:
        BB += 1

    grid = (pl.cdiv(B, BB), nP, pl.cdiv(Q, TQ), pl.cdiv(D, TD))

    grid_spec = pltpu.PrefetchScalarGridSpec(
        num_scalar_prefetch=0,
        grid=grid,
        in_specs=[
            pl.BlockSpec((BB, TP, TD), lambda b, i, j, k: (b, i, k)),   # passage
            pl.BlockSpec((BB, TQ, TD), lambda b, i, j, k: (b, j, k)),   # query
            pl.BlockSpec((3, TD), lambda b, i, j, k: (0, k)),           # weights
        ],
        out_specs=pl.BlockSpec((BB, TP, TQ), lambda b, i, j, k: (b, i, j)),
        scratch_shapes=[
            pltpu.VMEM((BB, TP, TQ), jnp.float32),   # bilinear accumulator
            pltpu.VMEM((BB, TP, 1), jnp.float32),    # s_p (cached across j)
            pltpu.VMEM((BB, 1, TQ), jnp.float32),    # s_q
        ])

    est_use = _vmem_bytes(BB, TP, TQ, TD, in_b, out_b)
    vmem_limit = int(min(int(cap * 0.9), max(est_use * 2, 32 << 20)))

    cost = pl.CostEstimate(
        flops=int(2 * B * P * Q * D + 2 * B * (P + Q) * D),
        transcendentals=0,
        bytes_accessed=int((B * P * D + B * Q * D) * in_b
                           + B * P * Q * out_b + 3 * D * 4))

    out = pl.pallas_call(
        functools.partial(_bidaf_kernel, matmul_dtype=mm_dt),
        out_shape=jax.ShapeDtypeStruct((B, P, Q), out_dtype),
        grid_spec=grid_spec,
        compiler_params=pltpu.CompilerParams(
            dimension_semantics=("parallel", "parallel", "arbitrary", "arbitrary"),
            vmem_limit_bytes=vmem_limit),
        cost_estimate=cost,
    )(x_p, x_q, w)
    return out


# --------------------------------------------------------------------------
# Reference & init
# --------------------------------------------------------------------------
def _xavier_normal(key, shape):
    # torch.nn.init.xavier_normal_ on a (1, 1, D) tensor: std = sqrt(1 / D).
    d = shape[-1]
    std = (1.0 / d) ** 0.5
    return std * jax.random.normal(key, shape, dtype=jnp.float32)


def _reference(passage, query, w_concat, w_passage, w_query):
    temp = passage * w_concat[None]                               # (B,P,D)
    m = jnp.einsum("bpd,bqd->bpq", temp, query)                   # (B,P,Q)
    s_p = jnp.sum(passage * w_passage[None], axis=2)[:, :, None]  # (B,P,1)
    s_q = jnp.sum(query * w_query[None], axis=2)[:, None, :]      # (B,1,Q)
    return s_p + s_q + m


if __name__ == "__main__":
    key = jax.random.PRNGKey(0)
    k_p, k_q, k_wc, k_wp, k_wq, k_p2, k_q2 = jax.random.split(key, 7)

    # ---- Test 1: module-sized shapes (matches the PyTorch __init__) ----
    batch_size = 2
    passage_vec_size = 16
    query_vec_size = 16          # must equal passage_vec_size for the bmm
    D = 2 * passage_vec_size     # feature dim = 32
    passage_length = 8
    query_length = 8

    passage_vectors = jax.random.normal(
        k_p, (batch_size, passage_length, D), dtype=jnp.float32)
    query_vectors = jax.random.normal(
        k_q, (batch_size, query_length, 2 * query_vec_size), dtype=jnp.float32)

    w_concat = _xavier_normal(k_wc, (1, 1, 2 * passage_vec_size)).reshape(1, -1)
    w_query = _xavier_normal(k_wq, (1, 1, 2 * query_vec_size)).reshape(1, -1)
    w_passage = _xavier_normal(k_wp, (1, 1, 2 * passage_vec_size)).reshape(1, -1)

    ref = _reference(passage_vectors, query_vectors,
                     w_concat, w_passage, w_query)

    # Default fast path: bf16 MXU operands / streaming, f32 accumulation.
    out = jax.block_until_ready(bidaf_bilinear_forward(
        passage_vectors, query_vectors, w_concat, w_passage, w_query))
    assert out.shape == (batch_size, passage_length, query_length)
    assert jnp.allclose(out, ref, atol=5e-2, rtol=5e-2), "bf16 mismatch"

    # Opt-in exact path: f32 MXU operands.
    out_f32 = jax.block_until_ready(bidaf_bilinear_forward(
        passage_vectors, query_vectors, w_concat, w_passage, w_query,
        matmul_dtype=jnp.float32))
    assert jnp.allclose(out_f32, ref, atol=1e-3, rtol=1e-3), "f32 mismatch"

    # ---- Test 2: ragged P/Q tiles, multi-tile Q (s_p reuse), D accumulation ----
    B2, P2, Q2, D2 = 3, 20, 160, 256
    p2 = jax.random.normal(k_p2, (B2, P2, D2), dtype=jnp.float32)
    q2 = jax.random.normal(k_q2, (B2, Q2, D2), dtype=jnp.float32)
    wc2 = _xavier_normal(jax.random.fold_in(key, 1), (1, 1, D2)).reshape(1, -1)
    wp2 = _xavier_normal(jax.random.fold_in(key, 2), (1, 1, D2)).reshape(1, -1)
    wq2 = _xavier_normal(jax.random.fold_in(key, 3), (1, 1, D2)).reshape(1, -1)
    ref2 = _reference(p2, q2, wc2, wp2, wq2)

    out2 = jax.block_until_ready(bidaf_bilinear_forward(
        p2, q2, wc2, wp2, wq2, tile_p=8, tile_q=128, tile_d=128))
    assert out2.shape == (B2, P2, Q2)
    assert jnp.allclose(out2, ref2, atol=5e-2, rtol=5e-2), "tiled-path mismatch"

    # TODO(synk): batch_size / passage_length / query_length forward() args are
    # implicit in the array shapes and not passed separately.
    print("KERNEL_OK")
</pallas_src>

<mosaic_0001>
module attributes {stable_mosaic.version = 11 : i64} {
  func.func @_bidaf_kernel(%arg0: i32, %arg1: i32, %arg2: i32, %arg3: i32, %arg4: memref<1x8x32xbf16, #tpu.memory_space<vmem>>, %arg5: memref<1x8x32xbf16, #tpu.memory_space<vmem>>, %arg6: memref<3x32xf32, #tpu.memory_space<vmem>>, %arg7: memref<1x8x8xf32, #tpu.memory_space<vmem>>, %arg8: memref<1x8x8xf32, #tpu.memory_space<vmem>>, %arg9: memref<1x8x1xf32, #tpu.memory_space<vmem>>, %arg10: memref<1x1x8xf32, #tpu.memory_space<vmem>>) attributes {dimension_semantics = [#tpu.dimension_semantics<parallel>, #tpu.dimension_semantics<parallel>, #tpu.dimension_semantics<arbitrary>, #tpu.dimension_semantics<arbitrary>], iteration_bounds = array<i64: 2, 1, 1, 1>, scalar_prefetch = 0 : i64, scratch_operands = 3 : i64, tpu.core_type = #tpu.core_type<tc>, window_params = [{transform_indices = @transform_0, window_bounds = array<i64: 1, 8, 32>}, {transform_indices = @transform_1, window_bounds = array<i64: 1, 8, 32>}, {transform_indices = @transform_2, window_bounds = array<i64: 3, 32>}, {transform_indices = @transform_3, window_bounds = array<i64: 1, 8, 8>}]} {
    %c0 = arith.constant 0 : index
    %c0_0 = arith.constant 0 : index
    %c0_1 = arith.constant 0 : index
    %0 = vector.load %arg4[%c0, %c0_0, %c0_1] : memref<1x8x32xbf16, #tpu.memory_space<vmem>>, vector<1x8x32xbf16>
    %c0_2 = arith.constant 0 : index
    %c0_3 = arith.constant 0 : index
    %c0_4 = arith.constant 0 : index
    %1 = vector.load %arg5[%c0_2, %c0_3, %c0_4] : memref<1x8x32xbf16, #tpu.memory_space<vmem>>, vector<1x8x32xbf16>
    %c0_5 = arith.constant 0 : index
    %c0_6 = arith.constant 0 : index
    %2 = vector.load %arg6[%c0_5, %c0_6] : memref<3x32xf32, #tpu.memory_space<vmem>>, vector<1x32xf32>
    %c1 = arith.constant 1 : index
    %c0_7 = arith.constant 0 : index
    %3 = vector.load %arg6[%c1, %c0_7] : memref<3x32xf32, #tpu.memory_space<vmem>>, vector<1x32xf32>
    %c2 = arith.constant 2 : index
    %c0_8 = arith.constant 0 : index
    %4 = vector.load %arg6[%c2, %c0_8] : memref<3x32xf32, #tpu.memory_space<vmem>>, vector<1x32xf32>
    %c0_i32 = arith.constant 0 : i32
    %5 = arith.cmpi eq, %arg3, %c0_i32 : i32
    %6 = arith.extui %5 : i1 to i32
    %c0_i32_9 = arith.constant 0 : i32
    %7 = arith.cmpi ne, %6, %c0_i32_9 : i32
    scf.if %7 {
      %cst_30 = arith.constant 0.000000e+00 : f32
      %33 = vector.broadcast %cst_30 : f32 to vector<1x8x8xf32>
      %c0_31 = arith.constant 0 : index
      %c0_32 = arith.constant 0 : index
      %c0_33 = arith.constant 0 : index
      %34 = vector.load %arg8[%c0_31, %c0_32, %c0_33] : memref<1x8x8xf32, #tpu.memory_space<vmem>>, vector<1x8x8xf32>
      tpu.vector_store %arg8[%c0_31, %c0_32, %c0_33], %33 {strides = array<i32>} : memref<1x8x8xf32, #tpu.memory_space<vmem>>, vector<1x8x8xf32>,
      %cst_34 = arith.constant 0.000000e+00 : f32
      %35 = vector.broadcast %cst_34 : f32 to vector<1x1x8xf32>
      %c0_35 = arith.constant 0 : index
      %c0_36 = arith.constant 0 : index
      %c0_37 = arith.constant 0 : index
      %36 = vector.load %arg10[%c0_35, %c0_36, %c0_37] : memref<1x1x8xf32, #tpu.memory_space<vmem>>, vector<1x1x8xf32>
      tpu.vector_store %arg10[%c0_35, %c0_36, %c0_37], %35 {strides = array<i32>} : memref<1x1x8xf32, #tpu.memory_space<vmem>>, vector<1x1x8xf32>,
    } else {
    }
    %c0_i32_10 = arith.constant 0 : i32
    %8 = arith.cmpi eq, %arg2, %c0_i32_10 : i32
    %c0_i32_11 = arith.constant 0 : i32
    %9 = arith.cmpi eq, %arg3, %c0_i32_11 : i32
    %10 = arith.andi %8, %9 : i1
    %11 = arith.extui %10 : i1 to i32
    %c0_i32_12 = arith.constant 0 : i32
    %12 = arith.cmpi ne, %11, %c0_i32_12 : i32
    scf.if %12 {
      %cst_30 = arith.constant 0.000000e+00 : f32
      %33 = vector.broadcast %cst_30 : f32 to vector<1x8x1xf32>
      %c0_31 = arith.constant 0 : index
      %c0_32 = arith.constant 0 : index
      %c0_33 = arith.constant 0 : index
      %34 = vector.load %arg9[%c0_31, %c0_32, %c0_33] : memref<1x8x1xf32, #tpu.memory_space<vmem>>, vector<1x8x1xf32>
      tpu.vector_store %arg9[%c0_31, %c0_32, %c0_33], %33 {strides = array<i32>} : memref<1x8x1xf32, #tpu.memory_space<vmem>>, vector<1x8x1xf32>,
    } else {
    }
    %13 = arith.truncf %2 : vector<1x32xf32> to vector<1x32xbf16>
    %14 = vector.shape_cast %13 : vector<1x32xbf16> to vector<1x1x32xbf16>
    %15 = vector.broadcast %14 : vector<1x1x32xbf16> to vector<1x8x32xbf16>
    %16 = arith.mulf %1, %15 : vector<1x8x32xbf16>
    %c0_13 = arith.constant 0 : index
    %c0_14 = arith.constant 0 : index
    %c0_15 = arith.constant 0 : index
    %17 = vector.load %arg8[%c0_13, %c0_14, %c0_15] : memref<1x8x8xf32, #tpu.memory_space<vmem>>, vector<1x8x8xf32>
    %cst = arith.constant dense<0.000000e+00> : vector<1x8x8xf32>
    %18 = tpu.matmul %0, %16, %cst {dimension_numbers = #tpu.dot_dimension_numbers<[2], [2], [1], [1], [0, 0, 0, 1, 1, 1], [0], [0]>} : vector<1x8x32xbf16>, vector<1x8x32xbf16>, vector<1x8x8xf32> -> vector<1x8x8xf32>
    %19 = arith.addf %17, %18 : vector<1x8x8xf32>
    %c0_16 = arith.constant 0 : index
    %c0_17 = arith.constant 0 : index
    %c0_18 = arith.constant 0 : index
    %20 = vector.load %arg8[%c0_16, %c0_17, %c0_18] : memref<1x8x8xf32, #tpu.memory_space<vmem>>, vector<1x8x8xf32>
    tpu.vector_store %arg8[%c0_16, %c0_17, %c0_18], %19 {strides = array<i32>} : memref<1x8x8xf32, #tpu.memory_space<vmem>>, vector<1x8x8xf32>,
    %c0_i32_19 = arith.constant 0 : i32
    %21 = arith.cmpi eq, %arg2, %c0_i32_19 : i32
    %22 = arith.extui %21 : i1 to i32
    %c0_i32_20 = arith.constant 0 : i32
    %23 = arith.cmpi ne, %22, %c0_i32_20 : i32
    scf.if %23 {
      %c0_30 = arith.constant 0 : index
      %c0_31 = arith.constant 0 : index
      %c0_32 = arith.constant 0 : index
      %33 = vector.load %arg9[%c0_30, %c0_31, %c0_32] : memref<1x8x1xf32, #tpu.memory_space<vmem>>, vector<1x8x1xf32>
      %34 = arith.extf %0 : vector<1x8x32xbf16> to vector<1x8x32xf32>
      %35 = vector.shape_cast %3 : vector<1x32xf32> to vector<1x1x32xf32>
      %36 = vector.broadcast %35 : vector<1x1x32xf32> to vector<1x8x32xf32>
      %37 = arith.mulf %34, %36 : vector<1x8x32xf32>
      %cst_33 = arith.constant dense<0.000000e+00> : vector<1x8xf32>
      %38 = vector.multi_reduction <add>, %37, %cst_33 [2] : vector<1x8x32xf32> to vector<1x8xf32>
      %39 = vector.shape_cast %38 : vector<1x8xf32> to vector<1x8x1xf32>
      %40 = arith.addf %33, %39 : vector<1x8x1xf32>
      %c0_34 = arith.constant 0 : index
      %c0_35 = arith.constant 0 : index
      %c0_36 = arith.constant 0 : index
      %41 = vector.load %arg9[%c0_34, %c0_35, %c0_36] : memref<1x8x1xf32, #tpu.memory_space<vmem>>, vector<1x8x1xf32>
      tpu.vector_store %arg9[%c0_34, %c0_35, %c0_36], %40 {strides = array<i32>} : memref<1x8x1xf32, #tpu.memory_space<vmem>>, vector<1x8x1xf32>,
    } else {
    }
    %24 = arith.truncf %4 : vector<1x32xf32> to vector<1x32xbf16>
    %25 = vector.shape_cast %24 : vector<1x32xbf16> to vector<1x1x32xbf16>
    %c0_21 = arith.constant 0 : index
    %c0_22 = arith.constant 0 : index
    %c0_23 = arith.constant 0 : index
    %26 = vector.load %arg10[%c0_21, %c0_22, %c0_23] : memref<1x1x8xf32, #tpu.memory_space<vmem>>, vector<1x1x8xf32>
    %cst_24 = arith.constant dense<0.000000e+00> : vector<1x1x8xf32>
    %27 = tpu.matmul %25, %1, %cst_24 {dimension_numbers = #tpu.dot_dimension_numbers<[2], [2], [1], [1], [0, 0, 0, 1, 1, 1], [0], [0]>} : vector<1x1x32xbf16>, vector<1x8x32xbf16>, vector<1x1x8xf32> -> vector<1x1x8xf32>
    %28 = arith.addf %26, %27 : vector<1x1x8xf32>
    %c0_25 = arith.constant 0 : index
    %c0_26 = arith.constant 0 : index
    %c0_27 = arith.constant 0 : index
    %29 = vector.load %arg10[%c0_25, %c0_26, %c0_27] : memref<1x1x8xf32, #tpu.memory_space<vmem>>, vector<1x1x8xf32>
    tpu.vector_store %arg10[%c0_25, %c0_26, %c0_27], %28 {strides = array<i32>} : memref<1x1x8xf32, #tpu.memory_space<vmem>>, vector<1x1x8xf32>,
    %c0_i32_28 = arith.constant 0 : i32
    %30 = arith.cmpi eq, %arg3, %c0_i32_28 : i32
    %31 = arith.extui %30 : i1 to i32
    %c0_i32_29 = arith.constant 0 : i32
    %32 = arith.cmpi ne, %31, %c0_i32_29 : i32
    scf.if %32 {
      %c0_30 = arith.constant 0 : index
      %c0_31 = arith.constant 0 : index
      %c0_32 = arith.constant 0 : index
      %33 = vector.load %arg8[%c0_30, %c0_31, %c0_32] : memref<1x8x8xf32, #tpu.memory_space<vmem>>, vector<1x8x8xf32>
      %c0_33 = arith.constant 0 : index
      %c0_34 = arith.constant 0 : index
      %c0_35 = arith.constant 0 : index
      %34 = vector.load %arg9[%c0_33, %c0_34, %c0_35] : memref<1x8x1xf32, #tpu.memory_space<vmem>>, vector<1x8x1xf32>
      %35 = vector.broadcast %34 : vector<1x8x1xf32> to vector<1x8x8xf32>
      %36 = arith.addf %33, %35 : vector<1x8x8xf32>
      %c0_36 = arith.constant 0 : index
      %c0_37 = arith.constant 0 : index
      %c0_38 = arith.constant 0 : index
      %37 = vector.load %arg10[%c0_36, %c0_37, %c0_38] : memref<1x1x8xf32, #tpu.memory_space<vmem>>, vector<1x1x8xf32>
      %38 = vector.broadcast %37 : vector<1x1x8xf32> to vector<1x8x8xf32>
      %39 = arith.addf %36, %38 : vector<1x8x8xf32>
      %c0_39 = arith.constant 0 : index
      %c0_40 = arith.constant 0 : index
      %c0_41 = arith.constant 0 : index
      %40 = vector.load %arg7[%c0_39, %c0_40, %c0_41] : memref<1x8x8xf32, #tpu.memory_space<vmem>>, vector<1x8x8xf32>
      tpu.vector_store %arg7[%c0_39, %c0_40, %c0_41], %39 {strides = array<i32>} : memref<1x8x8xf32, #tpu.memory_space<vmem>>, vector<1x8x8xf32>,
    } else {
    }
    return
  }
  func.func @transform_0(%arg0: i32, %arg1: i32, %arg2: i32, %arg3: i32) -> (i32, i32, i32) {
    %c0_i32 = arith.constant 0 : i32
    return %arg0, %arg1, %arg3 : i32, i32, i32
  }
  func.func @transform_1(%arg0: i32, %arg1: i32, %arg2: i32, %arg3: i32) -> (i32, i32, i32) {
    %c0_i32 = arith.constant 0 : i32
    return %arg0, %arg2, %arg3 : i32, i32, i32
  }
  func.func @transform_2(%arg0: i32, %arg1: i32, %arg2: i32, %arg3: i32) -> (i32, i32) {
    %c0_i32 = arith.constant 0 : i32
    %c0_i32_0 = arith.constant 0 : i32
    return %c0_i32, %arg3 : i32, i32
  }
  func.func @transform_3(%arg0: i32, %arg1: i32, %arg2: i32, %arg3: i32) -> (i32, i32, i32) {
    %c0_i32 = arith.constant 0 : i32
    return %arg0, %arg1, %arg2 : i32, i32, i32
  }
}

</mosaic_0001>

<llo_original>
// kernel: tpu_custom_call.1
$region0: #{tpu_custom_call.1}
  #allocation0 [shape = 'u32[]', space=smem, size = 0x4, offset = 0x4, fixed_abs, tag = 'smem constant byte address 0x4 - core index']
  #allocation1 [shape = 'u32[144,128]{1,0:T(1,128)}', space=vmem, size = 0x12000, scoped, tag = 'internal scratch']
  #allocation2 [shape = 'f32[1,8,8]{2,1,0:T(8,128)}', space=vmem, size = 0x1000, scoped, tag = 'scratch operand']
  #allocation3 [shape = 'f32[1,8,1]{2,1,0:T(8,128)}', space=vmem, size = 0x1000, scoped, tag = 'scratch operand']
  #allocation4 [shape = 'f32[1,1,8]{2,1,0:T(1,128)}', space=vmem, size = 0x200, scoped, tag = 'scratch operand']
  %s0 = inlined_call_operand.hbm [shape: bf16[2,8,32], index: 0, kind: input, shape index: {}]
  %s1 = inlined_call_operand.hbm [shape: bf16[2,8,32], index: 1, kind: input, shape index: {}]
  %s2 = inlined_call_operand.hbm [shape: f32[3,32], index: 2, kind: input, shape index: {}]
  %s3 = inlined_call_operand.hbm [shape: f32[2,8,8], index: 3, kind: output, shape index: {}]
  %s4 = sld [smem:[#allocation0]]
  $region73: #{tpu_custom_call.1} parent=0
    _
  %s6 = ssub.s32 1, %s4
  %s7 = scalar_select 0, %s6, %s4
  $region1: #{tpu_custom_call.1} parent=0
    #allocation5 [shape = 'u8[4096]{0}', space=vmem, size = 0x1000, scoped, tag = 'input window, operand 0']
    #allocation6 [shape = 's32[2]{0}', space=sflag, size = 0x8, scoped, tag = 'scoped memory for tpu_custom_call.1']
    #allocation7 [shape = 's32[2]{0}', space=sflag, size = 0x8, scoped, tag = 'scoped memory for tpu_custom_call.1']
    #allocation8 [shape = 'u8[4096]{0}', space=vmem, size = 0x1000, scoped, tag = 'input window, operand 1']
    #allocation9 [shape = 's32[2]{0}', space=sflag, size = 0x8, scoped, tag = 'scoped memory for tpu_custom_call.1']
    #allocation10 [shape = 'u8[2048]{0}', space=vmem, size = 0x800, scoped, tag = 'input window, operand 2, single buffered']
    #allocation11 [shape = 'u8[8192]{0}', space=vmem, size = 0x2000, scoped, tag = 'output window, operand 0']
    %8 = vsyncpa [#allocation6], 0
    %s9 = scalar_lea.sflag [#allocation6], 1
    %10 = vsyncpa %s9, 0
    %11 = vsyncpa [#allocation9], 0
    %s12 = scalar_lea.sflag [#allocation9], 1
    %13 = vsyncpa %s12, 0
    %14 = vsyncpa [#allocation7], 0
    %s15 = scalar_lea.sflag [#allocation7], 1
    %16 = vsyncpa %s15, 0
    loop: start=0, step=1, limit=4
    $region2: #{tpu_custom_call.1} parent=1 // loop_pre_header
      _
    $region3: #{tpu_custom_call.1} parent=1 // loop_header
      %s18 = sphi 0, %s22
      %p19 = scmp.ge.s32.totalorder %s18, 4
      %s25 = sphi 0, %s51
      %s26 = sphi 0, %s47
      %s27 = sphi 0, %s43
      %s28 = sphi 0, %s39
      %s29 = sphi 0, %s25
      %s30 = sphi 0, %s26
      %s31 = sphi 0, %s27
      %s32 = sphi 0, %s28
      %s33 = sphi 0, %s29
      %s34 = sphi 0, %s30
      %s35 = sphi 0, %s31
      %s36 = sphi 0, %s32
      %s58 = sphi 0, %s60
      %s61 = sphi 0, %s58
      %s62 = sphi 0, %s61
      %s78 = sphi 0, %s62
      %s88 = sphi 0, %s90
      %s91 = sphi 0, %s88
      %s92 = sphi 0, %s91
      %s108 = sphi 0, %s92
      %s114 = sphi 0, %s116
      %s117 = sphi 0, %s114
      %s118 = sphi 0, %s117
      %s134 = sphi 0, %s118
      %s144 = sphi 0, %s146
      %s147 = sphi 0, %s144
      %s148 = sphi 0, %s147
      %s164 = sphi 0, %s148
    $region4: #{tpu_custom_call.1} parent=1 // loop_header_branch
      %21 = sbr.rel (%p19) target = $region8
    $region5: #{tpu_custom_call.1} parent=1 // loop_body
      %s23 = ssub.s32 %s18, 1
      %s24 = ssub.s32 %s18, 2
      %s37 = sadd.s32 1, %s28
      %p38 = scmp.ge.s32.totalorder %s37, 1
      %s39 = scalar_select %p38, 0, %s37
      %s40 = sadd.s32 1, %s27
      %s41 = scalar_select %p38, %s40, %s27
      %p42 = scmp.ge.s32.totalorder %s41, 1
      %s43 = scalar_select %p42, 0, %s41
      %s44 = sadd.s32 1, %s26
      %s45 = scalar_select %p42, %s44, %s26
      %p46 = scmp.ge.s32.totalorder %s45, 1
      %s47 = scalar_select %p46, 0, %s45
      %s48 = sadd.s32 1, %s25
      %s49 = scalar_select %p46, %s48, %s25
      %p50 = scmp.ge.s32.totalorder %s49, 2
      %s51 = scalar_select %p50, 0, %s49
      %s52 = ssub.s32 %s25, %s51
      %s53 = ssub.s32 %s26, %s47
      %s54 = sor.u32 %s52, %s53
      %s55 = ssub.s32 %s28, %s39
      %s56 = sor.u32 %s54, %s55
      %p57 = scmp.eq.s32.totalorder %s56, 0
      %s59 = sadd.s32 %s58, 1
      %s60 = scalar_select %p57, %s58, %s59
      %p63 = pneg %p57
      %p64 = scmp.eq.s32.totalorder %s18, 1
      %p65 = por %p63, %p64
      %p66 = scmp.ne.s32.totalorder %s58, %s61
      %p67 = scmp.eq.s32.totalorder %s18, 0
      %p68 = por %p66, %p67
      %p69 = scmp.ne.s32.totalorder %s58, %s61
      %p70 = scmp.eq.s32.totalorder %s23, 1
      %p71 = por %p69, %p70
      %p72 = scmp.ne.s32.totalorder %s61, %s62
      %p73 = scmp.eq.s32.totalorder %s23, 0
      %p74 = por %p72, %p73
      %p75 = scmp.ne.s32.totalorder %s61, %s62
      %p76 = scmp.eq.s32.totalorder %s24, 1
      %p77 = por %p75, %p76
      %p79 = scmp.ne.s32.totalorder %s62, %s78
      %p80 = scmp.eq.s32.totalorder %s24, 0
      %p81 = por %p79, %p80
      %s82 = ssub.s32 %s25, %s51
      %s83 = ssub.s32 %s27, %s43
      %s84 = sor.u32 %s82, %s83
      %s85 = ssub.s32 %s28, %s39
      %s86 = sor.u32 %s84, %s85
      %p87 = scmp.eq.s32.totalorder %s86, 0
      %s89 = sadd.s32 %s88, 1
      %s90 = scalar_select %p87, %s88, %s89
      %p93 = pneg %p87
      %p94 = scmp.eq.s32.totalorder %s18, 1
      %p95 = por %p93, %p94
      %p96 = scmp.ne.s32.totalorder %s88, %s91
      %p97 = scmp.eq.s32.totalorder %s18, 0
      %p98 = por %p96, %p97
      %p99 = scmp.ne.s32.totalorder %s88, %s91
      %p100 = scmp.eq.s32.totalorder %s23, 1
      %p101 = por %p99, %p100
      %p102 = scmp.ne.s32.totalorder %s91, %s92
      %p103 = scmp.eq.s32.totalorder %s23, 0
      %p104 = por %p102, %p103
      %p105 = scmp.ne.s32.totalorder %s91, %s92
      %p106 = scmp.eq.s32.totalorder %s24, 1
      %p107 = por %p105, %p106
      %p109 = scmp.ne.s32.totalorder %s92, %s108
      %p110 = scmp.eq.s32.totalorder %s24, 0
      %p111 = por %p109, %p110
      %s112 = ssub.s32 %s28, %s39
      %p113 = scmp.eq.s32.totalorder %s112, 0
      %s115 = sadd.s32 %s114, 1
      %s116 = scalar_select %p113, %s114, %s115
      %p119 = pneg %p113
      %p120 = scmp.eq.s32.totalorder %s18, 1
      %p121 = por %p119, %p120
      %p122 = scmp.ne.s32.totalorder %s114, %s117
      %p123 = scmp.eq.s32.totalorder %s18, 0
      %p124 = por %p122, %p123
      %p125 = scmp.ne.s32.totalorder %s114, %s117
      %p126 = scmp.eq.s32.totalorder %s23, 1
      %p127 = por %p125, %p126
      %p128 = scmp.ne.s32.totalorder %s117, %s118
      %p129 = scmp.eq.s32.totalorder %s23, 0
      %p130 = por %p128, %p129
      %p131 = scmp.ne.s32.totalorder %s117, %s118
      %p132 = scmp.eq.s32.totalorder %s24, 1
      %p133 = por %p131, %p132
      %p135 = scmp.ne.s32.totalorder %s118, %s134
      %p136 = scmp.eq.s32.totalorder %s24, 0
      %p137 = por %p135, %p136
      %s138 = ssub.s32 %s25, %s51
      %s139 = ssub.s32 %s26, %s47
      %s140 = sor.u32 %s138, %s139
      %s141 = ssub.s32 %s27, %s43
      %s142 = sor.u32 %s140, %s141
      %p143 = scmp.eq.s32.totalorder %s142, 0
      %s145 = sadd.s32 %s144, 1
      %s146 = scalar_select %p143, %s144, %s145
      %p149 = pneg %p143
      %p150 = scmp.eq.s32.totalorder %s18, 1
      %p151 = por %p149, %p150
      %p152 = scmp.ne.s32.totalorder %s144, %s147
      %p153 = scmp.eq.s32.totalorder %s18, 0
      %p154 = por %p152, %p153
      %p155 = scmp.ne.s32.totalorder %s144, %s147
      %p156 = scmp.eq.s32.totalorder %s23, 1
      %p157 = por %p155, %p156
      %p158 = scmp.ne.s32.totalorder %s147, %s148
      %p159 = scmp.eq.s32.totalorder %s23, 0
      %p160 = por %p158, %p159
      %p161 = scmp.ne.s32.totalorder %s147, %s148
      %p162 = scmp.eq.s32.totalorder %s24, 1
      %p163 = por %p161, %p162
      %p165 = scmp.ne.s32.totalorder %s148, %s164
      %p166 = scmp.eq.s32.totalorder %s24, 0
      %p167 = por %p165, %p166
      %p168 = scmp.le.s32.totalorder 1, %s18
      %p169 = scmp.lt.s32.totalorder %s18, 3
      %p170 = pnand %p168, %p169
      %p171 = pneg %p170
      // Predicated region
      $region9: #{tpu_custom_call.1} parent=5 // pred_check
        _
      $region10: #{tpu_custom_call.1} parent=5 // pred_check_branch
        %173 = sbr.rel (%p170) target = $region12
      $region11: #{tpu_custom_call.1} parent=5 // pred_region
        %s174 = ssub.s32 %s18, 1
        // Predicated region
        $region13: #{tpu_custom_call.1} parent=11 // pred_check
          %p175 = pneg %p130
        $region14: #{tpu_custom_call.1} parent=11 // pred_check_branch
          %177 = sbr.rel (%p175) target = $region16
        $region15: #{tpu_custom_call.1} parent=11 // pred_region
          %s179 = ssub.s32 64, 64
          %180 = vsyncadd [#allocation9], %s179
          %s181 = smul.addr %s32, 64
          %s182 = scalar_lea.hbm %s2, %s181
          %s184 = sshll.u32 [#allocation10], 4
          %s185 = int_to_ptr.vmem [resolvable:$true] %s184
          %187 = dma.hbm_to_vmem [thread:$0]  %s182, 64, %s185, [#allocation9]
        $region16: #{tpu_custom_call.1} parent=11 // pred_fallthru
          _
      $region12: #{tpu_custom_call.1} parent=5 // pred_fallthru
        _
      %p188 = scmp.lt.s32.totalorder %s18, 2
      // Predicated region
      $region17: #{tpu_custom_call.1} parent=5 // pred_check
        %p189 = pneg %p188
      $region18: #{tpu_custom_call.1} parent=5 // pred_check_branch
        %191 = sbr.rel (%p189) target = $region20
      $region19: #{tpu_custom_call.1} parent=5 // pred_region
        // Predicated region
        $region21: #{tpu_custom_call.1} parent=19 // pred_check
          %p192 = pneg %p68
        $region22: #{tpu_custom_call.1} parent=19 // pred_check_branch
          %194 = sbr.rel (%p192) target = $region24
        $region23: #{tpu_custom_call.1} parent=19 // pred_region
          %s195 = sand.u32 %s58, 1
          %s196 = scalar_lea.sflag [#allocation6], %s195
          %s197 = sand.u32 %s58, 1
          %s198 = smul.addr %s197, 4
          %s199 = scalar_lea.vmem [#allocation5], %s198
          %s201 = ssub.s32 64, 64
          %202 = vsyncadd %s196, %s201
          %s203 = sadd.s32 %s28, %s26
          %s204 = sadd.s32 %s203, %s25
          %s205 = smul.addr %s204, 64
          %s206 = scalar_lea.hbm %s0, %s205
          %s208 = sshll.u32 %s199, 4
          %s209 = int_to_ptr.vmem [resolvable:$true] %s208
          %211 = dma.hbm_to_vmem [thread:$0]  %s206, 64, %s209, %s196
        $region24: #{tpu_custom_call.1} parent=19 // pred_fallthru
          _
        // Predicated region
        $region25: #{tpu_custom_call.1} parent=19 // pred_check
          %p212 = pneg %p98
        $region26: #{tpu_custom_call.1} parent=19 // pred_check_branch
          %214 = sbr.rel (%p212) target = $region28
        $region27: #{tpu_custom_call.1} parent=19 // pred_region
          %s215 = sand.u32 %s18, 1
          %s216 = scalar_lea.sflag [#allocation9], %s215
          %s217 = sand.u32 %s88, 1
          %s218 = smul.addr %s217, 4
          %s219 = scalar_lea.vmem [#allocation8], %s218
          %s221 = ssub.s32 64, 64
          %222 = vsyncadd %s216, %s221
          %s223 = sadd.s32 %s28, %s27
          %s224 = sadd.s32 %s223, %s25
          %s225 = smul.addr %s224, 64
          %s226 = scalar_lea.hbm %s1, %s225
          %s228 = sshll.u32 %s219, 4
          %s229 = int_to_ptr.vmem [resolvable:$true] %s228
          %231 = dma.hbm_to_vmem [thread:$0]  %s226, 64, %s229, %s216
        $region28: #{tpu_custom_call.1} parent=19 // pred_fallthru
          _
      $region20: #{tpu_custom_call.1} parent=5 // pred_fallthru
        _
      %p232 = scmp.le.s32.totalorder 1, %s18
      %p233 = scmp.lt.s32.totalorder %s18, 3
      %p234 = pnand %p232, %p233
      %p235 = pneg %p234
      // Predicated region
      $region29: #{tpu_custom_call.1} parent=5 // pred_check
        _
      $region30: #{tpu_custom_call.1} parent=5 // pred_check_branch
        %237 = sbr.rel (%p234) target = $region32
      $region31: #{tpu_custom_call.1} parent=5 // pred_region
        %s238 = ssub.s32 %s18, 1
        %s239 = sand.u32 %s61, 1
        %s240 = scalar_lea.sflag [#allocation6], %s239
        %s241 = sand.u32 %s61, 1
        %s242 = smul.addr %s241, 4
        %s243 = scalar_lea.vmem [#allocation5], %s242
        // Predicated region
        $region33: #{tpu_custom_call.1} parent=31 // pred_check
          %p244 = pneg %p74
        $region34: #{tpu_custom_call.1} parent=31 // pred_check_branch
          %246 = sbr.rel (%p244) target = $region36
        $region35: #{tpu_custom_call.1} parent=31 // pred_region
          %247 = dma.done %s240, 64
        $region36: #{tpu_custom_call.1} parent=31 // pred_fallthru
          _
        %s248 = sand.u32 %s23, 1
        %s249 = scalar_lea.sflag [#allocation9], %s248
        %s250 = sand.u32 %s91, 1
        %s251 = smul.addr %s250, 4
        %s252 = scalar_lea.vmem [#allocation8], %s251
        // Predicated region
        $region37: #{tpu_custom_call.1} parent=31 // pred_check
          %p253 = pneg %p104
        $region38: #{tpu_custom_call.1} parent=31 // pred_check_branch
          %255 = sbr.rel (%p253) target = $region40
        $region39: #{tpu_custom_call.1} parent=31 // pred_region
          %256 = dma.done %s249, 64
        $region40: #{tpu_custom_call.1} parent=31 // pred_fallthru
          _
        // Predicated region
        $region41: #{tpu_custom_call.1} parent=31 // pred_check
          %p257 = pneg %p130
        $region42: #{tpu_custom_call.1} parent=31 // pred_check_branch
          %259 = sbr.rel (%p257) target = $region44
        $region43: #{tpu_custom_call.1} parent=31 // pred_region
          %260 = dma.done [#allocation9], 64
        $region44: #{tpu_custom_call.1} parent=31 // pred_fallthru
          _
        %s261 = sand.u32 %s61, 1
        %s262 = scalar_lea.sflag [#allocation6], %s261
        %s263 = sand.u32 %s61, 1
        %s264 = smul.addr %s263, 4
        %s265 = scalar_lea.vmem [#allocation5], %s264
        %p266 = pneg %p74
        %p267 = pneg %p71
        %s268 = sand.u32 %s23, 1
        %s269 = scalar_lea.sflag [#allocation9], %s268
        %s270 = sand.u32 %s91, 1
        %s271 = smul.addr %s270, 4
        %s272 = scalar_lea.vmem [#allocation8], %s271
        %p273 = pneg %p104
        %p274 = pneg %p101
        %p275 = pneg %p130
        %p276 = pneg %p127
        %p277 = pneg %p160
        %p278 = pneg %p157
        %s279 = sand.u32 %s147, 1
        %s280 = scalar_lea.sflag [#allocation7], %s279
        %s281 = sand.u32 %s147, 1
        %s282 = smul.addr %s281, 8
        %s283 = scalar_lea.vmem [#allocation11], %s282
        %v285 = vld [vmem:[%s243] sm:$0xf]
        %v286 = vld [vmem:[%s252] sm:$0xf]
        %v287 = vld [vmem:[#allocation10] sm:$0x1]
        %v288 = vld [vmem:[#allocation10 + $0x1] sm:$0x1]
        %v289 = vld [vmem:[#allocation10 + $0x2] sm:$0x1]
        %p290 = scmp.eq.s32.totalorder %s32, 0
        // Predicated region
        $region45: #{tpu_custom_call.1} parent=31 // pred_check
          %p291 = pneg %p290
        $region46: #{tpu_custom_call.1} parent=31 // pred_check_branch
          %293 = sbr.rel (%p291) target = $region48
        $region47: #{tpu_custom_call.1} parent=31 // pred_region
          %vm294 = vcmask 64512
          %295 = vst.msk [vmem:[#allocation2] sm:$0xff] %vm294, 0.0
          %vm296 = vcmask 57344
          %297 = vst.msk [vmem:[#allocation4] sm:$0x1] %vm296, 0.0
        $region48: #{tpu_custom_call.1} parent=31 // pred_fallthru
          _
        %p298 = scmp.eq.s32.totalorder %s31, 0
        %p299 = pnand %p298, %p290
        %p300 = pneg %p299
        // Predicated region
        $region49: #{tpu_custom_call.1} parent=31 // pred_check
          _
        $region50: #{tpu_custom_call.1} parent=31 // pred_check_branch
          %302 = sbr.rel (%p299) target = $region52
        $region51: #{tpu_custom_call.1} parent=31 // pred_region
          %vm303 = vcmask 7168
          %304 = vst.msk [vmem:[#allocation3] sm:$0xff] %vm303, 0.0
        $region52: #{tpu_custom_call.1} parent=31 // pred_fallthru
          _
        %v305 = vpack.c.bf16 %v287, %v287
        %v307 = vpack.i.b16 %v305, %v305
        %v309 = vlaneseq
        %v310 = vshrl.u32 %v309, 7
        %v311 = vsub.s32 0, %v310
        %v312 = vrot.slane %v307, %v311
        %v313 = vmul.bf16 %v286, %v312
        %v314 = vld [vmem:[#allocation2] sm:$0xff]
        %vm315 = vcmask 261120
        %v317 = vsel %vm315, %v285, 0
        %v320 = vsel %vm315, %v313, 0
        %322 = vmatprep.subr.bf16.mxu0 0
        %323 = vmatpush1.bf16.xpose.msra.mxu0 0
        %324 = vmatprep.subr.bf16.mxu0 0
        %325 = vmatpush1.bf16.xpose.msra.mxu0 0
        %326 = vmatprep.subr.bf16.mxu0 0
        %327 = vmatpush1.bf16.xpose.msra.mxu0 0
        %328 = vmatprep.subr.bf16.mxu0 0
        %329 = vmatpush1.bf16.xpose.msra.mxu0 0
        %330 = vmatprep.subr.bf16.mxu0 0
        %331 = vmatpush1.bf16.xpose.msra.mxu0 0
        %332 = vmatprep.subr.bf16.mxu0 0
        %333 = vmatpush1.bf16.xpose.msra.mxu0 0
        %334 = vmatprep.subr.bf16.mxu0 0
        %335 = vmatpush1.bf16.xpose.msra.mxu0 0
        %336 = vmatprep.subr.bf16.mxu0 0
        %337 = vmatpush1.bf16.xpose.msra.mxu0 %v320
        %338 = vmatprep.subr.bf16.mxu0 0
        %339 = vmatpush2.bf16.xpose.msra.mxu0 0
        %340 = vmatprep.subr.bf16.mxu0 0
        %341 = vmatpush2.bf16.xpose.msra.mxu0 0
        %342 = vmatprep.subr.bf16.mxu0 0
        %343 = vmatpush2.bf16.xpose.msra.mxu0 0
        %344 = vmatprep.subr.bf16.mxu0 0
        %345 = vmatpush2.bf16.xpose.msra.mxu0 0
        %346 = vmatprep.subr.bf16.mxu0 0
        %347 = vmatpush2.bf16.xpose.msra.mxu0 0
        %348 = vmatprep.subr.bf16.mxu0 0
        %349 = vmatpush2.bf16.xpose.msra.mxu0 0
        %350 = vmatprep.subr.bf16.mxu0 0
        %351 = vmatpush2.bf16.xpose.msra.mxu0 0
        %352 = vmatprep.subr.bf16.mxu0 0
        %353 = vmatpush2.bf16.xpose.msra.mxu0 0
        %354 = vmatprep.mubr.bf16.mxu0 0
        %355 = vmatmul.mubr.bf16.gmra.mxu0 %v317
        %v356 = vpop.f32.mrf.mxu0
        %v357 = vadd.f32 0.0, %v356
        %v358 = vpop.f32.mrf.mxu0
        %v359 = vpop.f32.mrf.mxu0
        %v360 = vpop.f32.mrf.mxu0
        %361 = vdwg.mxu0
        %v362 = vadd.f32 %v314, %v357
        %vm363 = vcmask 64512
        %364 = vst.msk [vmem:[#allocation2] sm:$0xff] %vm363, %v362
        // Predicated region
        $region53: #{tpu_custom_call.1} parent=31 // pred_check
          %p365 = pneg %p298
        $region54: #{tpu_custom_call.1} parent=31 // pred_check_branch
          %367 = sbr.rel (%p365) target = $region56
        $region55: #{tpu_custom_call.1} parent=31 // pred_region
          %v368 = vld [vmem:[#allocation3] sm:$0xff]
          %v369 = vunpack.c.l.bf16 %v285
          %v370 = vlaneseq
          %v371 = vshrl.u32 %v370, 7
          %v372 = vsub.s32 0, %v371
          %v373 = vrot.slane %v288, %v372
          %v374 = vmul.f32 %v369, %v373
          %v375 = vsel %vm315, %v374, 0.0
          %376 = vadd.xlane.f32.xlu0 %v375
          %v377 = vpop.xlane.xlu0 %376
          %v378 = vadd.f32 %v368, %v377
          %vm379 = vcmask 7168
          %380 = vst.msk [vmem:[#allocation3] sm:$0xff] %vm379, %v378
        $region56: #{tpu_custom_call.1} parent=31 // pred_fallthru
          _
        %v381 = vpack.c.bf16 %v289, %v289
        %v382 = vld [vmem:[#allocation4] sm:$0x1]
        %v384 = vsel %vm315, %v381, 0
        %v387 = vsel %vm315, %v286, 0
        %389 = vmatprep.subr.bf16.mxu0 0
        %390 = vmatpush1.bf16.xpose.msra.mxu0 0
        %391 = vmatprep.subr.bf16.mxu0 0
        %392 = vmatpush1.bf16.xpose.msra.mxu0 0
        %393 = vmatprep.subr.bf16.mxu0 0
        %394 = vmatpush1.bf16.xpose.msra.mxu0 0
        %395 = vmatprep.subr.bf16.mxu0 0
        %396 = vmatpush1.bf16.xpose.msra.mxu0 0
        %397 = vmatprep.subr.bf16.mxu0 0
        %398 = vmatpush1.bf16.xpose.msra.mxu0 0
        %399 = vmatprep.subr.bf16.mxu0 0
        %400 = vmatpush1.bf16.xpose.msra.mxu0 0
        %401 = vmatprep.subr.bf16.mxu0 0
        %402 = vmatpush1.bf16.xpose.msra.mxu0 0
        %403 = vmatprep.subr.bf16.mxu0 0
        %404 = vmatpush1.bf16.xpose.msra.mxu0 %v387
        %405 = vmatprep.subr.bf16.mxu0 0
        %406 = vmatpush2.bf16.xpose.msra.mxu0 0
        %407 = vmatprep.subr.bf16.mxu0 0
        %408 = vmatpush2.bf16.xpose.msra.mxu0 0
        %409 = vmatprep.subr.bf16.mxu0 0
        %410 = vmatpush2.bf16.xpose.msra.mxu0 0
        %411 = vmatprep.subr.bf16.mxu0 0
        %412 = vmatpush2.bf16.xpose.msra.mxu0 0
        %413 = vmatprep.subr.bf16.mxu0 0
        %414 = vmatpush2.bf16.xpose.msra.mxu0 0
        %415 = vmatprep.subr.bf16.mxu0 0
        %416 = vmatpush2.bf16.xpose.msra.mxu0 0
        %417 = vmatprep.subr.bf16.mxu0 0
        %418 = vmatpush2.bf16.xpose.msra.mxu0 0
        %419 = vmatprep.subr.bf16.mxu0 0
        %420 = vmatpush2.bf16.xpose.msra.mxu0 0
        %421 = vmatprep.mubr.bf16.mxu0 0
        %422 = vmatmul.mubr.bf16.gmra.mxu0 %v384
        %v423 = vpop.f32.mrf.mxu0
        %v424 = vadd.f32 0.0, %v423
        %v425 = vpop.f32.mrf.mxu0
        %v426 = vpop.f32.mrf.mxu0
        %v427 = vpop.f32.mrf.mxu0
        %428 = vdwg.mxu0
        %v429 = vadd.f32 %v382, %v424
        %vm430 = vcmask 57344
        %431 = vst.msk [vmem:[#allocation4] sm:$0x1] %vm430, %v429
        // Predicated region
        $region57: #{tpu_custom_call.1} parent=31 // pred_check
          %p432 = pneg %p290
        $region58: #{tpu_custom_call.1} parent=31 // pred_check_branch
          %434 = sbr.rel (%p432) target = $region60
        $region59: #{tpu_custom_call.1} parent=31 // pred_region
          %v435 = vld [vmem:[#allocation2] sm:$0xff]
          %v436 = vld [vmem:[#allocation3] sm:$0xff]
          %438 = vset.pattern.permute.xlu0 0
          %439 = vperm.xlu0 %438, %v436
          %v440 = vpop.permute.xlu0 %439
          %v442 = vadd.f32 %v435, %v440
          %v443 = vld [vmem:[#allocation4] sm:$0x1]
          %v445 = vlaneseq
          %v446 = vshrl.u32 %v445, 7
          %v447 = vsub.s32 0, %v446
          %v448 = vrot.slane %v443, %v447
          %v450 = vadd.f32 %v442, %v448
          %451 = vst.msk [vmem:[%s283] sm:$0xff] %vm363, %v450
        $region60: #{tpu_custom_call.1} parent=31 // pred_fallthru
          _
        %s452 = sand.u32 %s147, 1
        %s453 = scalar_lea.sflag [#allocation7], %s452
        %s454 = sand.u32 %s147, 1
        %s455 = smul.addr %s454, 8
        %s456 = scalar_lea.vmem [#allocation11], %s455
        // Predicated region
        $region61: #{tpu_custom_call.1} parent=31 // pred_check
          %p457 = pneg %p157
        $region62: #{tpu_custom_call.1} parent=31 // pred_check_branch
          %459 = sbr.rel (%p457) target = $region64
        $region63: #{tpu_custom_call.1} parent=31 // pred_region
          %s461 = ssub.s32 128, 128
          %462 = vsyncadd %s453, %s461
          %s463 = sadd.s32 %s31, %s30
          %s464 = sadd.s32 %s463, %s29
          %s465 = smul.addr %s464, 128
          %s466 = scalar_lea.hbm %s3, %s465
          %s468 = sshll.u32 %s456, 4
          %s469 = int_to_ptr.vmem [resolvable:$true] %s468
          %471 = dma.vmem_to_hbm [thread:$0]  %s469, 128, %s466, %s453
        $region64: #{tpu_custom_call.1} parent=31 // pred_fallthru
          _
      $region32: #{tpu_custom_call.1} parent=5 // pred_fallthru
        _
      %p472 = scmp.le.s32.totalorder 2, %s18
      // Predicated region
      $region65: #{tpu_custom_call.1} parent=5 // pred_check
        %p473 = pneg %p472
      $region66: #{tpu_custom_call.1} parent=5 // pred_check_branch
        %475 = sbr.rel (%p473) target = $region68
      $region67: #{tpu_custom_call.1} parent=5 // pred_region
        %s476 = ssub.s32 %s18, 2
        // Predicated region
        $region69: #{tpu_custom_call.1} parent=67 // pred_check
          %p477 = pneg %p163
        $region70: #{tpu_custom_call.1} parent=67 // pred_check_branch
          %479 = sbr.rel (%p477) target = $region72
        $region71: #{tpu_custom_call.1} parent=67 // pred_region
          %s480 = sand.u32 %s148, 1
          %s481 = scalar_lea.sflag [#allocation7], %s480
          %s482 = sand.u32 %s148, 1
          %s483 = smul.addr %s482, 8
          %s484 = scalar_lea.vmem [#allocation11], %s483
          %485 = dma.done %s481, 128
        $region72: #{tpu_custom_call.1} parent=67 // pred_fallthru
          _
      $region68: #{tpu_custom_call.1} parent=5 // pred_fallthru
        _
    $region6: #{tpu_custom_call.1} parent=1 // loop_footer
      %s22 = sadd.s32 1, %s18
    $region7: #{tpu_custom_call.1} parent=1 // loop_footer_branch
      %17 = sbr.rel target = $region3
    $region8: #{tpu_custom_call.1} parent=1 // loop_exit
      _
    %486 = vsyncpa [#allocation6], 1
    %s487 = scalar_lea.sflag [#allocation6], 1
    %488 = vsyncpa %s487, 1
    %489 = vsyncpa [#allocation9], 1
    %s490 = scalar_lea.sflag [#allocation9], 1
    %491 = vsyncpa %s490, 1
    %492 = vsyncpa [#allocation7], 1
    %s493 = scalar_lea.sflag [#allocation7], 1
    %494 = vsyncpa %s493, 1

</llo_original>
